<compile_context>
chip_gen: v5e
topology: v5e:2x2
jax: 0.10.0
libtpu: 0.0.40
codegen_flags: <defaults>
</compile_context>

<pallas_src>
import functools

import numpy as np
import jax
import jax.numpy as jnp
from jax.experimental import pallas as pl
from jax.experimental.pallas import tpu as pltpu


def build_rope_cache(rot_dim, max_position_embeddings, base=10000.0,
                     dtype=jnp.float32):
    """Equivalent of RotaryEmbedding.__init__/_set_cos_sin_cache.

    PyTorch stores the cache in float16; we keep float32 (TPU friendly) --
    the math is identical.
    """
    inv_freq = 1.0 / (base ** (jnp.arange(0, rot_dim, 2, dtype=jnp.float32) / rot_dim))
    t = jnp.arange(max_position_embeddings, dtype=jnp.float32)
    freqs = jnp.outer(t, inv_freq)                      # [max_pos, rot_dim // 2]
    return jnp.cos(freqs).astype(dtype), jnp.sin(freqs).astype(dtype)


def _rope_kernel(route_ref, cos_ref, sin_ref, q_ref, k_ref, qo_ref, ko_ref, *,
                 half, shift2, dual, heads, compute_dtype):
    """Lane-dense rotate-half on a (token_tile, heads*head_dim) slab.

    route_ref : (2, W)   signed routing masks, precomputed at trace time
                         row 0 -> roll(+half) term, row 1 -> roll(shift2) term
    cos_ref   : (tT, D)  per-token cos (1.0 on pass-through channels)
    sin_ref   : (tT, D)  per-token sin (0.0 on pass-through channels)
    q/k       : (tT, W)  flattened (tokens, heads*head_dim)
    """
    cos_d = cos_ref[...]
    sin_d = sin_ref[...]
    if heads > 1:
        # Head broadcast in VMEM only (minor-dim concat); pure vreg copies when
        # D % 128 == 0, a few lane shifts otherwise.  Replaces the old (T, W)
        # float32 cos/sin HBM streams.
        cos_w = jnp.concatenate([cos_d] * heads, axis=-1)
        sin_w = jnp.concatenate([sin_d] * heads, axis=-1)
    else:
        cos_w, sin_w = cos_d, sin_d

    # Coefficients shared by q and k, computed once per grid step.
    c1 = sin_w * route_ref[0:1, :]                       # roll(+half) contribution
    c2 = sin_w * route_ref[1:2, :] if dual else None     # roll(shift2) contribution

    def rotate(x_ref, o_ref):
        x = x_ref[...].astype(compute_dtype)
        y = x * cos_w + pltpu.roll(x, half, axis=1) * c1
        if dual:
            y = y + pltpu.roll(x, shift2, axis=1) * c2
        o_ref[...] = y.astype(o_ref.dtype)

    rotate(q_ref, qo_ref)
    rotate(k_ref, ko_ref)


def _vmem_capacity_bytes():
    try:
        return int(pltpu.get_tpu_info().vmem_capacity_bytes)
    except Exception:
        return 64 * 1024 * 1024       # v7x-safe fallback (smallest VMEM generation)


def _is_v5():
    try:
        return "v5" in jax.devices()[0].device_kind.lower()
    except Exception:
        return False


def _sublane_multiple(dtype):
    # dtype-native sublane packing: 8 for f32, 16 for bf16, 32 for int8/fp8
    return max(8, 32 // np.dtype(dtype).itemsize)


def _choose_token_tile(T, per_token_bytes, block_budget_bytes, sublane, *,
                       min_steps=8, max_tile=1024):
    if T <= sublane:
        return T                       # full-extent block is always layout-legal
    tT = int(block_budget_bytes // max(per_token_bytes, 1))
    tT = min(tT, max_tile)
    # Keep >= ~min_steps grid steps: restores DMA/compute overlap and gives the
    # single "parallel" token axis enough steps to shard across both v7x TCs.
    tT = min(tT, -(-T // min_steps))
    tT = max(sublane, (tT // sublane) * sublane)
    return min(tT, T)


def rotary_embedding(q, k, positions, cos_cached, sin_cached, *, token_tile=None,
                     compute_dtype=None):
    """RotaryEmbedding.forward semantics; returns (q_rot, k_rot).

    q, k: (num_tokens, num_heads, head_dim); positions: (num_tokens,) int32.
    The flattened q/k operands are donated (aliased to the outputs), mirroring
    the in-place PyTorch update -- callers should use the returned arrays.
    """
    T, H, D = q.shape
    Tk, Hk, Dk = k.shape
    assert T == Tk and D == Dk
    # Phi uses MHA (num_kv_heads == num_heads); one coefficient set is shared.
    assert Hk == H, "fused RoPE kernel assumes num_kv_heads == num_heads (Phi MHA)"

    rot_half = cos_cached.shape[-1]
    rot_dim = 2 * rot_half
    half = rot_half
    W = H * D
    shift2 = (W - half) % W
    dual = (shift2 != half)            # degenerate only when W == rot_dim

    if compute_dtype is None:
        # bf16 math on bf16-native VPUs (v6e/v7x); keep f32 math on v5e / f32 in.
        if q.dtype == jnp.bfloat16 and not _is_v5():
            compute_dtype = jnp.bfloat16
        else:
            compute_dtype = jnp.float32
    coef_dtype = compute_dtype

    # ---- tiny wrapper-side glue: per-token (T, head_dim) coefficients only
    # (head broadcast happens in-kernel), so the coefficient HBM stream is
    # H x smaller than q/k instead of matching them.
    cos_t = jnp.take(cos_cached, positions, axis=0).astype(coef_dtype)   # (T, half)
    sin_t = jnp.take(sin_cached, positions, axis=0).astype(coef_dtype)
    ones = jnp.ones((T, D - rot_dim), coef_dtype)
    zeros = jnp.zeros((T, D - rot_dim), coef_dtype)
    cos_d = jnp.concatenate([cos_t, cos_t, ones], axis=-1)               # (T, D)
    sin_d = jnp.concatenate([sin_t, sin_t, zeros], axis=-1)              # (T, D) unsigned

    # Signed routing masks, hoisted to trace time.
    # pltpu.roll follows np.roll: roll(x, s)[i] = x[(i - s) % n].
    j = np.arange(W) % D
    first = j < half
    second = (j >= half) & (j < rot_dim)
    r_plus = np.where(second, 1.0, 0.0)     # roll(+half) delivers x[w-half] -> +sin
    r_minus = np.where(first, -1.0, 0.0)    # roll(W-half) delivers x[w+half] -> -sin
    if not dual:                            # W == rot_dim: both rolls coincide
        r_plus = r_plus + r_minus
        r_minus = np.zeros_like(r_minus)
    route = jnp.asarray(np.stack([r_plus, r_minus], axis=0), dtype=coef_dtype)  # (2, W)

    q_flat = q.reshape(T, W)           # free: contiguous in HBM
    k_flat = k.reshape(T, W)

    # ---- tile sizing: conservative VMEM budget (v7x has only 64 MiB) and at
    # least ~8 grid steps for pipelining / megacore sharding.
    vmem_cap = _vmem_capacity_bytes()
    block_budget = vmem_cap // 3
    sublane = _sublane_multiple(q.dtype)
    per_token = 4 * W * q.dtype.itemsize                     # q,k in + out blocks
    per_token += 2 * D * np.dtype(coef_dtype).itemsize       # cos + sin blocks
    per_token *= 2                                            # double buffering
    if token_tile is None:
        tT = _choose_token_tile(T, per_token, block_budget, sublane)
    else:
        tT = min(int(token_tile), T)
        if tT < T:
            tT = max(sublane, (tT // sublane) * sublane)
    grid = (pl.cdiv(T, tT),)

    row_spec = pl.BlockSpec((tT, W), lambda i: (i, 0))
    coef_spec = pl.BlockSpec((tT, D), lambda i: (i, 0))
    route_spec = pl.BlockSpec((2, W), lambda i: (0, 0))
    # TODO(synk): sweep pipeline_mode=pl.Buffered(3) on the q/k specs if
    # profiling shows exposed DMA at step boundaries.

    kernel = functools.partial(_rope_kernel, half=half, shift2=shift2, dual=dual,
                               heads=H, compute_dtype=compute_dtype)
    vmem_limit = min((vmem_cap * 5) // 8, 96 * 1024 * 1024)

    q_out, k_out = pl.pallas_call(
        kernel,
        out_shape=(jax.ShapeDtypeStruct((T, W), q.dtype),
                   jax.ShapeDtypeStruct((T, W), k.dtype)),
        grid=grid,
        in_specs=[route_spec, coef_spec, coef_spec, row_spec, row_spec],
        out_specs=(row_spec, row_spec),
        # Mirror the PyTorch in-place update of q and k (donation of q_flat/k_flat).
        input_output_aliases={3: 0, 4: 1},
        compiler_params=pltpu.CompilerParams(
            dimension_semantics=("parallel",),
            vmem_limit_bytes=int(vmem_limit)),
    )(route, cos_d, sin_d, q_flat, k_flat)

    return q_out.reshape(T, H, D), k_out.reshape(T, Hk, D)


if __name__ == "__main__":
    # Small Phi-like config: head_dim=32, rot_dim=16 (partial rotary),
    # 4 query heads, 4 kv heads, 40 tokens, max positions 64.  H*D = 128 lanes.
    T, H, HKV, D, ROT_DIM, MAX_POS = 40, 4, 4, 32, 16, 64

    key = jax.random.PRNGKey(0)
    kq, kk, kp = jax.random.split(key, 3)
    q = jax.random.normal(kq, (T, H, D), dtype=jnp.float32)
    k = jax.random.normal(kk, (T, HKV, D), dtype=jnp.float32)
    positions = jax.random.randint(kp, (T,), 0, MAX_POS, dtype=jnp.int32)

    cos_cached, sin_cached = build_rope_cache(ROT_DIM, MAX_POS, base=10000.0)

    # Pure-JAX reference (computed before the call: the kernel donates q/k operands).
    def _ref(x):
        half = ROT_DIM // 2
        c = jnp.take(cos_cached, positions, axis=0)[:, None, :]
        s = jnp.take(sin_cached, positions, axis=0)[:, None, :]
        xf = x.astype(jnp.float32)
        x1, x2, rest = xf[..., :half], xf[..., half:ROT_DIM], xf[..., ROT_DIM:]
        return jnp.concatenate([x1 * c - x2 * s, x2 * c + x1 * s, rest], axis=-1)

    q_expected = _ref(q)
    k_expected = _ref(k)

    # 1) Default auto-sized tiles (multi-step grid, f32 math).
    q_out, k_out = rotary_embedding(q, k, positions, cos_cached, sin_cached)
    jax.block_until_ready((q_out, k_out))
    assert q_out.shape == q.shape and k_out.shape == k.shape
    assert jnp.allclose(q_out, q_expected, atol=1e-5), "q mismatch (auto tile)"
    assert jnp.allclose(k_out, k_expected, atol=1e-5), "k mismatch (auto tile)"

    # 2) Explicit ragged tiling (16-row tiles over 40 tokens) + output aliasing.
    q_out2, k_out2 = rotary_embedding(q, k, positions, cos_cached, sin_cached,
                                      token_tile=16)
    jax.block_until_ready((q_out2, k_out2))
    assert jnp.allclose(q_out2, q_expected, atol=1e-5), "q mismatch (ragged tile)"
    assert jnp.allclose(k_out2, k_expected, atol=1e-5), "k mismatch (ragged tile)"

    # 3) bf16 q/k path (bf16 math on v6e/v7x, f32 math on v5e; 16-row sublane
    #    rounding + ragged last tile).
    q_bf = q.astype(jnp.bfloat16)
    k_bf = k.astype(jnp.bfloat16)
    q_out3, k_out3 = rotary_embedding(q_bf, k_bf, positions, cos_cached, sin_cached)
    jax.block_until_ready((q_out3, k_out3))
    qe_bf = _ref(q_bf)
    ke_bf = _ref(k_bf)
    assert jnp.allclose(q_out3.astype(jnp.float32), qe_bf, atol=1e-1), "q mismatch (bf16)"
    assert jnp.allclose(k_out3.astype(jnp.float32), ke_bf, atol=1e-1), "k mismatch (bf16)"

    print("KERNEL_OK")
</pallas_src>

<mosaic_0001>
module attributes {stable_mosaic.version = 11 : i64} {
  func.func @_rope_kernel(%arg0: i32, %arg1: memref<2x128xf32, #tpu.memory_space<vmem>>, %arg2: memref<8x32xf32, #tpu.memory_space<vmem>>, %arg3: memref<8x32xf32, #tpu.memory_space<vmem>>, %arg4: memref<8x128xf32, #tpu.memory_space<vmem>>, %arg5: memref<8x128xf32, #tpu.memory_space<vmem>>, %arg6: memref<8x128xf32, #tpu.memory_space<vmem>>, %arg7: memref<8x128xf32, #tpu.memory_space<vmem>>) attributes {dimension_semantics = [#tpu.dimension_semantics<parallel>], iteration_bounds = array<i64: 5>, scalar_prefetch = 0 : i64, scratch_operands = 0 : i64, tpu.core_type = #tpu.core_type<tc>, window_params = [{pipeline_mode = #tpu.pipeline_mode<synchronous>, transform_indices = @transform_0, window_bounds = array<i64: 2, 128>}, {transform_indices = @transform_1, window_bounds = array<i64: 8, 32>}, {transform_indices = @transform_2, window_bounds = array<i64: 8, 32>}, {transform_indices = @transform_3, window_bounds = array<i64: 8, 128>}, {transform_indices = @transform_4, window_bounds = array<i64: 8, 128>}, {transform_indices = @transform_5, window_bounds = array<i64: 8, 128>}, {transform_indices = @transform_6, window_bounds = array<i64: 8, 128>}]} {
    %c0 = arith.constant 0 : index
    %c0_0 = arith.constant 0 : index
    %0 = vector.load %arg2[%c0, %c0_0] : memref<8x32xf32, #tpu.memory_space<vmem>>, vector<8x32xf32>
    %c0_1 = arith.constant 0 : index
    %c0_2 = arith.constant 0 : index
    %1 = vector.load %arg3[%c0_1, %c0_2] : memref<8x32xf32, #tpu.memory_space<vmem>>, vector<8x32xf32>
    %2 = tpu.concatenate %0, %0, %0, %0 in 1 : vector<8x32xf32>, vector<8x32xf32>, vector<8x32xf32>, vector<8x32xf32> -> vector<8x128xf32>
    %3 = tpu.concatenate %1, %1, %1, %1 in 1 : vector<8x32xf32>, vector<8x32xf32>, vector<8x32xf32>, vector<8x32xf32> -> vector<8x128xf32>
    %c0_3 = arith.constant 0 : index
    %c0_4 = arith.constant 0 : index
    %4 = vector.load %arg1[%c0_3, %c0_4] : memref<2x128xf32, #tpu.memory_space<vmem>>, vector<1x128xf32>
    %5 = vector.broadcast %4 : vector<1x128xf32> to vector<8x128xf32>
    %6 = arith.mulf %3, %5 : vector<8x128xf32>
    %c1 = arith.constant 1 : index
    %c0_5 = arith.constant 0 : index
    %7 = vector.load %arg1[%c1, %c0_5] : memref<2x128xf32, #tpu.memory_space<vmem>>, vector<1x128xf32>
    %8 = vector.broadcast %7 : vector<1x128xf32> to vector<8x128xf32>
    %9 = arith.mulf %3, %8 : vector<8x128xf32>
    %c0_6 = arith.constant 0 : index
    %c0_7 = arith.constant 0 : index
    %10 = vector.load %arg4[%c0_6, %c0_7] : memref<8x128xf32, #tpu.memory_space<vmem>>, vector<8x128xf32>
    %11 = arith.mulf %10, %2 : vector<8x128xf32>
    %c8_i32 = arith.constant 8 : i32
    %12 = tpu.dynamic_rotate %10 by %c8_i32 dim 1 : vector<8x128xf32>, i32 -> vector<8x128xf32>
    %13 = arith.mulf %12, %6 : vector<8x128xf32>
    %14 = arith.addf %11, %13 : vector<8x128xf32>
    %c120_i32 = arith.constant 120 : i32
    %15 = tpu.dynamic_rotate %10 by %c120_i32 dim 1 : vector<8x128xf32>, i32 -> vector<8x128xf32>
    %16 = arith.mulf %15, %9 : vector<8x128xf32>
    %17 = arith.addf %14, %16 : vector<8x128xf32>
    %c0_8 = arith.constant 0 : index
    %c0_9 = arith.constant 0 : index
    %18 = vector.load %arg6[%c0_8, %c0_9] : memref<8x128xf32, #tpu.memory_space<vmem>>, vector<8x128xf32>
    tpu.vector_store %arg6[%c0_8, %c0_9], %17 {strides = array<i32>} : memref<8x128xf32, #tpu.memory_space<vmem>>, vector<8x128xf32>,
    %c0_10 = arith.constant 0 : index
    %c0_11 = arith.constant 0 : index
    %19 = vector.load %arg5[%c0_10, %c0_11] : memref<8x128xf32, #tpu.memory_space<vmem>>, vector<8x128xf32>
    %20 = arith.mulf %19, %2 : vector<8x128xf32>
    %c8_i32_12 = arith.constant 8 : i32
    %21 = tpu.dynamic_rotate %19 by %c8_i32_12 dim 1 : vector<8x128xf32>, i32 -> vector<8x128xf32>
    %22 = arith.mulf %21, %6 : vector<8x128xf32>
    %23 = arith.addf %20, %22 : vector<8x128xf32>
    %c120_i32_13 = arith.constant 120 : i32
    %24 = tpu.dynamic_rotate %19 by %c120_i32_13 dim 1 : vector<8x128xf32>, i32 -> vector<8x128xf32>
    %25 = arith.mulf %24, %9 : vector<8x128xf32>
    %26 = arith.addf %23, %25 : vector<8x128xf32>
    %c0_14 = arith.constant 0 : index
    %c0_15 = arith.constant 0 : index
    %27 = vector.load %arg7[%c0_14, %c0_15] : memref<8x128xf32, #tpu.memory_space<vmem>>, vector<8x128xf32>
    tpu.vector_store %arg7[%c0_14, %c0_15], %26 {strides = array<i32>} : memref<8x128xf32, #tpu.memory_space<vmem>>, vector<8x128xf32>,
    return
  }
  func.func @transform_0(%arg0: i32) -> (i32, i32) {
    %c0_i32 = arith.constant 0 : i32
    %c0_i32_0 = arith.constant 0 : i32
    %c0_i32_1 = arith.constant 0 : i32
    return %c0_i32, %c0_i32_0 : i32, i32
  }
  func.func @transform_1(%arg0: i32) -> (i32, i32) {
    %c0_i32 = arith.constant 0 : i32
    %c0_i32_0 = arith.constant 0 : i32
    return %arg0, %c0_i32 : i32, i32
  }
  func.func @transform_2(%arg0: i32) -> (i32, i32) {
    %c0_i32 = arith.constant 0 : i32
    %c0_i32_0 = arith.constant 0 : i32
    return %arg0, %c0_i32 : i32, i32
  }
  func.func @transform_3(%arg0: i32) -> (i32, i32) {
    %c0_i32 = arith.constant 0 : i32
    %c0_i32_0 = arith.constant 0 : i32
    return %arg0, %c0_i32 : i32, i32
  }
  func.func @transform_4(%arg0: i32) -> (i32, i32) {
    %c0_i32 = arith.constant 0 : i32
    %c0_i32_0 = arith.constant 0 : i32
    return %arg0, %c0_i32 : i32, i32
  }
  func.func @transform_5(%arg0: i32) -> (i32, i32) {
    %c0_i32 = arith.constant 0 : i32
    %c0_i32_0 = arith.constant 0 : i32
    return %arg0, %c0_i32 : i32, i32
  }
  func.func @transform_6(%arg0: i32) -> (i32, i32) {
    %c0_i32 = arith.constant 0 : i32
    %c0_i32_0 = arith.constant 0 : i32
    return %arg0, %c0_i32 : i32, i32
  }
}

</mosaic_0001>

<llo_original>
// kernel: tpu_custom_call.1
$region0: #{tpu_custom_call.1}
  #allocation0 [shape = 'u32[]', space=smem, size = 0x4, offset = 0x4, fixed_abs, tag = 'smem constant byte address 0x4 - core index']
  #allocation1 [shape = 'u32[72,128]{1,0:T(1,128)}', space=vmem, size = 0x9000, scoped, tag = 'internal scratch']
  %s0 = inlined_call_operand.vmem [shape: f32[2,128], index: 0, kind: input, shape index: {}]
  %s1 = inlined_call_operand.vmem [shape: f32[40,32], index: 1, kind: input, shape index: {}]
  %s2 = inlined_call_operand.vmem [shape: f32[40,32], index: 2, kind: input, shape index: {}]
  %s3 = inlined_call_operand.hbm [shape: f32[40,128], index: 3, kind: input, shape index: {}, may-alias: {3,5}]
  %s4 = inlined_call_operand.hbm [shape: f32[40,128], index: 4, kind: input, shape index: {}, may-alias: {4,6}]
  %s5 = inlined_call_operand.hbm [shape: f32[40,128], index: 5, kind: output, shape index: {0}, may-alias: {3,5}]
  %s6 = inlined_call_operand.hbm [shape: f32[40,128], index: 6, kind: output, shape index: {1}, may-alias: {4,6}]
  %7 = xla_tuple %s5, %s6
  %s8 = sld [smem:[#allocation0]]
  $region69: #{tpu_custom_call.1} parent=0
    _
  %s10 = ssub.s32 1, %s8
  %s11 = scalar_select 0, %s10, %s8
  $region1: #{tpu_custom_call.1} parent=0
    #allocation2 [shape = 'u8[8192]{0}', space=vmem, size = 0x2000, scoped, tag = 'input window, operand 3']
    #allocation3 [shape = 's32[2]{0}', space=sflag, size = 0x8, scoped, tag = 'scoped memory for tpu_custom_call.1']
    #allocation4 [shape = 's32[2]{0}', space=sflag, size = 0x8, scoped, tag = 'scoped memory for tpu_custom_call.1']
    #allocation5 [shape = 'u8[8192]{0}', space=vmem, size = 0x2000, scoped, tag = 'input window, operand 4']
    #allocation6 [shape = 's32[2]{0}', space=sflag, size = 0x8, scoped, tag = 'scoped memory for tpu_custom_call.1']
    #allocation7 [shape = 'u8[8192]{0}', space=vmem, size = 0x2000, scoped, tag = 'output window, operand 0']
    #allocation8 [shape = 'u8[8192]{0}', space=vmem, size = 0x2000, scoped, tag = 'output window, operand 1']
    #allocation9 [shape = 's32[2]{0}', space=sflag, size = 0x8, scoped, tag = 'scoped memory for tpu_custom_call.1']
    %12 = vsyncpa [#allocation3], 0
    %s13 = scalar_lea.sflag [#allocation3], 1
    %14 = vsyncpa %s13, 0
    %15 = vsyncpa [#allocation6], 0
    %s16 = scalar_lea.sflag [#allocation6], 1
    %17 = vsyncpa %s16, 0
    %18 = vsyncpa [#allocation4], 0
    %s19 = scalar_lea.sflag [#allocation4], 1
    %20 = vsyncpa %s19, 0
    %21 = vsyncpa [#allocation9], 0
    %s22 = scalar_lea.sflag [#allocation9], 1
    %23 = vsyncpa %s22, 0
    loop: start=0, step=1, limit=7
    $region2: #{tpu_custom_call.1} parent=1 // loop_pre_header
      _
    $region3: #{tpu_custom_call.1} parent=1 // loop_header
      %s25 = sphi 0, %s29
      %p26 = scmp.ge.s32.totalorder %s25, 7
      %s33 = sphi 0, %s33
      %s35 = sphi 0, %s33
      %s36 = sphi 0, %s35
      %s50 = sphi 0, %s36
      %s56 = sphi 0, %s58
      %s59 = sphi 0, %s56
      %s60 = sphi 0, %s59
      %s76 = sphi 0, %s60
      %s82 = sphi 0, %s84
      %s85 = sphi 0, %s82
      %s86 = sphi 0, %s85
      %s102 = sphi 0, %s86
      %s108 = sphi 0, %s110
      %s111 = sphi 0, %s108
      %s112 = sphi 0, %s111
      %s128 = sphi 0, %s112
      %s134 = sphi 0, %s136
      %s137 = sphi 0, %s134
      %s138 = sphi 0, %s137
      %s154 = sphi 0, %s138
      %s160 = sphi 0, %s162
      %s163 = sphi 0, %s160
      %s164 = sphi 0, %s163
      %s180 = sphi 0, %s164
      %s186 = sphi 0, %s188
      %s189 = sphi 0, %s186
      %s190 = sphi 0, %s189
      %s206 = sphi 0, %s190
    $region4: #{tpu_custom_call.1} parent=1 // loop_header_branch
      %28 = sbr.rel (%p26) target = $region8
    $region5: #{tpu_custom_call.1} parent=1 // loop_body
      %s30 = ssub.s32 %s25, 1
      %s31 = ssub.s32 %s25, 2
      %s32 = sadd.s32 %s25, 1
      %s34 = sadd.s32 %s33, 1
      %p37 = scmp.eq.s32.totalorder %s25, 4
      %p38 = scmp.ne.s32.totalorder %s33, %s35
      %p39 = scmp.eq.s32.totalorder %s25, 0
      %p40 = por %p38, %p39
      %p41 = scmp.ne.s32.totalorder %s33, %s35
      %p42 = scmp.eq.s32.totalorder %s30, 4
      %p43 = por %p41, %p42
      %p44 = scmp.ne.s32.totalorder %s35, %s36
      %p45 = scmp.eq.s32.totalorder %s30, 0
      %p46 = por %p44, %p45
      %p47 = scmp.ne.s32.totalorder %s35, %s36
      %p48 = scmp.eq.s32.totalorder %s31, 4
      %p49 = por %p47, %p48
      %p51 = scmp.ne.s32.totalorder %s36, %s50
      %p52 = scmp.eq.s32.totalorder %s31, 0
      %p53 = por %p51, %p52
      %s54 = ssub.s32 %s25, %s32
      %p55 = scmp.eq.s32.totalorder %s54, 0
      %s57 = sadd.s32 %s56, 1
      %s58 = scalar_select %p55, %s56, %s57
      %p61 = pneg %p55
      %p62 = scmp.eq.s32.totalorder %s25, 4
      %p63 = por %p61, %p62
      %p64 = scmp.ne.s32.totalorder %s56, %s59
      %p65 = scmp.eq.s32.totalorder %s25, 0
      %p66 = por %p64, %p65
      %p67 = scmp.ne.s32.totalorder %s56, %s59
      %p68 = scmp.eq.s32.totalorder %s30, 4
      %p69 = por %p67, %p68
      %p70 = scmp.ne.s32.totalorder %s59, %s60
      %p71 = scmp.eq.s32.totalorder %s30, 0
      %p72 = por %p70, %p71
      %p73 = scmp.ne.s32.totalorder %s59, %s60
      %p74 = scmp.eq.s32.totalorder %s31, 4
      %p75 = por %p73, %p74
      %p77 = scmp.ne.s32.totalorder %s60, %s76
      %p78 = scmp.eq.s32.totalorder %s31, 0
      %p79 = por %p77, %p78
      %s80 = ssub.s32 %s25, %s32
      %p81 = scmp.eq.s32.totalorder %s80, 0
      %s83 = sadd.s32 %s82, 1
      %s84 = scalar_select %p81, %s82, %s83
      %p87 = pneg %p81
      %p88 = scmp.eq.s32.totalorder %s25, 4
      %p89 = por %p87, %p88
      %p90 = scmp.ne.s32.totalorder %s82, %s85
      %p91 = scmp.eq.s32.totalorder %s25, 0
      %p92 = por %p90, %p91
      %p93 = scmp.ne.s32.totalorder %s82, %s85
      %p94 = scmp.eq.s32.totalorder %s30, 4
      %p95 = por %p93, %p94
      %p96 = scmp.ne.s32.totalorder %s85, %s86
      %p97 = scmp.eq.s32.totalorder %s30, 0
      %p98 = por %p96, %p97
      %p99 = scmp.ne.s32.totalorder %s85, %s86
      %p100 = scmp.eq.s32.totalorder %s31, 4
      %p101 = por %p99, %p100
      %p103 = scmp.ne.s32.totalorder %s86, %s102
      %p104 = scmp.eq.s32.totalorder %s31, 0
      %p105 = por %p103, %p104
      %s106 = ssub.s32 %s25, %s32
      %p107 = scmp.eq.s32.totalorder %s106, 0
      %s109 = sadd.s32 %s108, 1
      %s110 = scalar_select %p107, %s108, %s109
      %p113 = pneg %p107
      %p114 = scmp.eq.s32.totalorder %s25, 4
      %p115 = por %p113, %p114
      %p116 = scmp.ne.s32.totalorder %s108, %s111
      %p117 = scmp.eq.s32.totalorder %s25, 0
      %p118 = por %p116, %p117
      %p119 = scmp.ne.s32.totalorder %s108, %s111
      %p120 = scmp.eq.s32.totalorder %s30, 4
      %p121 = por %p119, %p120
      %p122 = scmp.ne.s32.totalorder %s111, %s112
      %p123 = scmp.eq.s32.totalorder %s30, 0
      %p124 = por %p122, %p123
      %p125 = scmp.ne.s32.totalorder %s111, %s112
      %p126 = scmp.eq.s32.totalorder %s31, 4
      %p127 = por %p125, %p126
      %p129 = scmp.ne.s32.totalorder %s112, %s128
      %p130 = scmp.eq.s32.totalorder %s31, 0
      %p131 = por %p129, %p130
      %s132 = ssub.s32 %s25, %s32
      %p133 = scmp.eq.s32.totalorder %s132, 0
      %s135 = sadd.s32 %s134, 1
      %s136 = scalar_select %p133, %s134, %s135
      %p139 = pneg %p133
      %p140 = scmp.eq.s32.totalorder %s25, 4
      %p141 = por %p139, %p140
      %p142 = scmp.ne.s32.totalorder %s134, %s137
      %p143 = scmp.eq.s32.totalorder %s25, 0
      %p144 = por %p142, %p143
      %p145 = scmp.ne.s32.totalorder %s134, %s137
      %p146 = scmp.eq.s32.totalorder %s30, 4
      %p147 = por %p145, %p146
      %p148 = scmp.ne.s32.totalorder %s137, %s138
      %p149 = scmp.eq.s32.totalorder %s30, 0
      %p150 = por %p148, %p149
      %p151 = scmp.ne.s32.totalorder %s137, %s138
      %p152 = scmp.eq.s32.totalorder %s31, 4
      %p153 = por %p151, %p152
      %p155 = scmp.ne.s32.totalorder %s138, %s154
      %p156 = scmp.eq.s32.totalorder %s31, 0
      %p157 = por %p155, %p156
      %s158 = ssub.s32 %s25, %s32
      %p159 = scmp.eq.s32.totalorder %s158, 0
      %s161 = sadd.s32 %s160, 1
      %s162 = scalar_select %p159, %s160, %s161
      %p165 = pneg %p159
      %p166 = scmp.eq.s32.totalorder %s25, 4
      %p167 = por %p165, %p166
      %p168 = scmp.ne.s32.totalorder %s160, %s163
      %p169 = scmp.eq.s32.totalorder %s25, 0
      %p170 = por %p168, %p169
      %p171 = scmp.ne.s32.totalorder %s160, %s163
      %p172 = scmp.eq.s32.totalorder %s30, 4
      %p173 = por %p171, %p172
      %p174 = scmp.ne.s32.totalorder %s163, %s164
      %p175 = scmp.eq.s32.totalorder %s30, 0
      %p176 = por %p174, %p175
      %p177 = scmp.ne.s32.totalorder %s163, %s164
      %p178 = scmp.eq.s32.totalorder %s31, 4
      %p179 = por %p177, %p178
      %p181 = scmp.ne.s32.totalorder %s164, %s180
      %p182 = scmp.eq.s32.totalorder %s31, 0
      %p183 = por %p181, %p182
      %s184 = ssub.s32 %s25, %s32
      %p185 = scmp.eq.s32.totalorder %s184, 0
      %s187 = sadd.s32 %s186, 1
      %s188 = scalar_select %p185, %s186, %s187
      %p191 = pneg %p185
      %p192 = scmp.eq.s32.totalorder %s25, 4
      %p193 = por %p191, %p192
      %p194 = scmp.ne.s32.totalorder %s186, %s189
      %p195 = scmp.eq.s32.totalorder %s25, 0
      %p196 = por %p194, %p195
      %p197 = scmp.ne.s32.totalorder %s186, %s189
      %p198 = scmp.eq.s32.totalorder %s30, 4
      %p199 = por %p197, %p198
      %p200 = scmp.ne.s32.totalorder %s189, %s190
      %p201 = scmp.eq.s32.totalorder %s30, 0
      %p202 = por %p200, %p201
      %p203 = scmp.ne.s32.totalorder %s189, %s190
      %p204 = scmp.eq.s32.totalorder %s31, 4
      %p205 = por %p203, %p204
      %p207 = scmp.ne.s32.totalorder %s190, %s206
      %p208 = scmp.eq.s32.totalorder %s31, 0
      %p209 = por %p207, %p208
      %p210 = scmp.le.s32.totalorder 1, %s25
      %p211 = scmp.lt.s32.totalorder %s25, 6
      %p212 = pnand %p210, %p211
      %p213 = pneg %p212
      // Predicated region
      $region9: #{tpu_custom_call.1} parent=5 // pred_check
        _
      $region10: #{tpu_custom_call.1} parent=5 // pred_check_branch
        %215 = sbr.rel (%p212) target = $region12
      $region11: #{tpu_custom_call.1} parent=5 // pred_region
        %s216 = ssub.s32 %s25, 1
        // Predicated region
        $region13: #{tpu_custom_call.1} parent=11 // pred_check
          %p217 = pneg %p46
        $region14: #{tpu_custom_call.1} parent=11 // pred_check_branch
          %219 = sbr.rel (%p217) target = $region16
        $region15: #{tpu_custom_call.1} parent=11 // pred_region
          _
        $region16: #{tpu_custom_call.1} parent=11 // pred_fallthru
          _
      $region12: #{tpu_custom_call.1} parent=5 // pred_fallthru
        _
      %p220 = scmp.lt.s32.totalorder %s25, 5
      // Predicated region
      $region17: #{tpu_custom_call.1} parent=5 // pred_check
        %p221 = pneg %p220
      $region18: #{tpu_custom_call.1} parent=5 // pred_check_branch
        %223 = sbr.rel (%p221) target = $region20
      $region19: #{tpu_custom_call.1} parent=5 // pred_region
        // Predicated region
        $region21: #{tpu_custom_call.1} parent=19 // pred_check
          %p224 = pneg %p66
        $region22: #{tpu_custom_call.1} parent=19 // pred_check_branch
          %226 = sbr.rel (%p224) target = $region24
        $region23: #{tpu_custom_call.1} parent=19 // pred_region
          %p227 = scmp.lt.s32.totalorder %s25, 4
          %s228 = scalar_select %p227, %s25, 4
          %s229 = smul.addr %s228, 8
          %s230 = scalar_lea.vmem %s1, %s229
        $region24: #{tpu_custom_call.1} parent=19 // pred_fallthru
          _
        // Predicated region
        $region25: #{tpu_custom_call.1} parent=19 // pred_check
          %p231 = pneg %p92
        $region26: #{tpu_custom_call.1} parent=19 // pred_check_branch
          %233 = sbr.rel (%p231) target = $region28
        $region27: #{tpu_custom_call.1} parent=19 // pred_region
          %p234 = scmp.lt.s32.totalorder %s25, 4
          %s235 = scalar_select %p234, %s25, 4
          %s236 = smul.addr %s235, 8
          %s237 = scalar_lea.vmem %s2, %s236
        $region28: #{tpu_custom_call.1} parent=19 // pred_fallthru
          _
        // Predicated region
        $region29: #{tpu_custom_call.1} parent=19 // pred_check
          %p238 = pneg %p118
        $region30: #{tpu_custom_call.1} parent=19 // pred_check_branch
          %240 = sbr.rel (%p238) target = $region32
        $region31: #{tpu_custom_call.1} parent=19 // pred_region
          %s241 = sand.u32 %s108, 1
          %s242 = scalar_lea.sflag [#allocation3], %s241
          %s243 = sand.u32 %s108, 1
          %s244 = smul.addr %s243, 8
          %s245 = scalar_lea.vmem [#allocation2], %s244
          %247 = vsyncadd %s242, 0
          %s248 = smul.addr %s25, 8
          %s249 = scalar_lea.hbm %s3, %s248
          %s251 = sshll.u32 %s249, 4
          %s252 = int_to_ptr.hbm [resolvable:$true] %s251
          %s253 = sshll.u32 %s245, 4
          %s254 = int_to_ptr.vmem [resolvable:$true] %s253
          %256 = dma.hbm_to_vmem [thread:$0]  %s252, 128, %s254, %s242
        $region32: #{tpu_custom_call.1} parent=19 // pred_fallthru
          _
        // Predicated region
        $region33: #{tpu_custom_call.1} parent=19 // pred_check
          %p257 = pneg %p144
        $region34: #{tpu_custom_call.1} parent=19 // pred_check_branch
          %259 = sbr.rel (%p257) target = $region36
        $region35: #{tpu_custom_call.1} parent=19 // pred_region
          %s260 = sand.u32 %s134, 1
          %s261 = scalar_lea.sflag [#allocation6], %s260
          %s262 = sand.u32 %s134, 1
          %s263 = smul.addr %s262, 8
          %s264 = scalar_lea.vmem [#allocation5], %s263
          %266 = vsyncadd %s261, 0
          %s267 = smul.addr %s25, 8
          %s268 = scalar_lea.hbm %s4, %s267
          %s270 = sshll.u32 %s268, 4
          %s271 = int_to_ptr.hbm [resolvable:$true] %s270
          %s272 = sshll.u32 %s264, 4
          %s273 = int_to_ptr.vmem [resolvable:$true] %s272
          %275 = dma.hbm_to_vmem [thread:$0]  %s271, 128, %s273, %s261
        $region36: #{tpu_custom_call.1} parent=19 // pred_fallthru
          _
      $region20: #{tpu_custom_call.1} parent=5 // pred_fallthru
        _
      %p276 = scmp.le.s32.totalorder 1, %s25
      %p277 = scmp.lt.s32.totalorder %s25, 6
      %p278 = pnand %p276, %p277
      %p279 = pneg %p278
      // Predicated region
      $region37: #{tpu_custom_call.1} parent=5 // pred_check
        _
      $region38: #{tpu_custom_call.1} parent=5 // pred_check_branch
        %281 = sbr.rel (%p278) target = $region40
      $region39: #{tpu_custom_call.1} parent=5 // pred_region
        %s282 = ssub.s32 %s25, 1
        %s283 = sand.u32 %s111, 1
        %s284 = scalar_lea.sflag [#allocation3], %s283
        %s285 = sand.u32 %s111, 1
        %s286 = smul.addr %s285, 8
        %s287 = scalar_lea.vmem [#allocation2], %s286
        // Predicated region
        $region41: #{tpu_custom_call.1} parent=39 // pred_check
          %p288 = pneg %p124
        $region42: #{tpu_custom_call.1} parent=39 // pred_check_branch
          %290 = sbr.rel (%p288) target = $region44
        $region43: #{tpu_custom_call.1} parent=39 // pred_region
          %292 = dma.done %s284, 128
        $region44: #{tpu_custom_call.1} parent=39 // pred_fallthru
          _
        %s293 = sand.u32 %s137, 1
        %s294 = scalar_lea.sflag [#allocation6], %s293
        %s295 = sand.u32 %s137, 1
        %s296 = smul.addr %s295, 8
        %s297 = scalar_lea.vmem [#allocation5], %s296
        // Predicated region
        $region45: #{tpu_custom_call.1} parent=39 // pred_check
          %p298 = pneg %p150
        $region46: #{tpu_custom_call.1} parent=39 // pred_check_branch
          %300 = sbr.rel (%p298) target = $region48
        $region47: #{tpu_custom_call.1} parent=39 // pred_region
          %302 = dma.done %s294, 128
        $region48: #{tpu_custom_call.1} parent=39 // pred_fallthru
          _
        %p303 = pneg %p46
        %p304 = pneg %p43
        %p305 = scmp.lt.s32.totalorder %s30, 4
        %s306 = scalar_select %p305, %s30, 4
        %s307 = smul.addr %s306, 8
        %s308 = scalar_lea.vmem %s1, %s307
        %p309 = pneg %p72
        %p310 = pneg %p69
        %p311 = scmp.lt.s32.totalorder %s30, 4
        %s312 = scalar_select %p311, %s30, 4
        %s313 = smul.addr %s312, 8
        %s314 = scalar_lea.vmem %s2, %s313
        %p315 = pneg %p98
        %p316 = pneg %p95
        %s317 = sand.u32 %s111, 1
        %s318 = scalar_lea.sflag [#allocation3], %s317
        %s319 = sand.u32 %s111, 1
        %s320 = smul.addr %s319, 8
        %s321 = scalar_lea.vmem [#allocation2], %s320
        %p322 = pneg %p124
        %p323 = pneg %p121
        %s324 = sand.u32 %s137, 1
        %s325 = scalar_lea.sflag [#allocation6], %s324
        %s326 = sand.u32 %s137, 1
        %s327 = smul.addr %s326, 8
        %s328 = scalar_lea.vmem [#allocation5], %s327
        %p329 = pneg %p150
        %p330 = pneg %p147
        %p331 = pneg %p176
        %p332 = pneg %p173
        %s333 = sand.u32 %s163, 1
        %s334 = scalar_lea.sflag [#allocation4], %s333
        %s335 = sand.u32 %s163, 1
        %s336 = smul.addr %s335, 8
        %s337 = scalar_lea.vmem [#allocation7], %s336
        %p338 = pneg %p202
        %p339 = pneg %p199
        %s340 = sand.u32 %s189, 1
        %s341 = scalar_lea.sflag [#allocation9], %s340
        %s342 = sand.u32 %s189, 1
        %s343 = smul.addr %s342, 8
        %s344 = scalar_lea.vmem [#allocation8], %s343
        %p345 = scmp.lt.s32.totalorder %s30, 4
        %s346 = scalar_select %p345, %s30, 4
        %s347 = smul.addr %s346, 8
        %s348 = scalar_lea.vmem %s1, %s347
        %p349 = scmp.lt.s32.totalorder %s30, 4
        %s350 = scalar_select %p349, %s30, 4
        %s351 = smul.addr %s350, 8
        %s352 = scalar_lea.vmem %s2, %s351
        %v353 = vld [vmem:[%s348] sm:$0xff]
        %v354 = vld [vmem:[%s352] sm:$0xff]
        %356 = vrot.lane.b32.xlu0 %v353, 32
        %v357 = vpop.permute.xlu0 %356
        %359 = vrot.lane.b32.xlu0 %v353, 64
        %v360 = vpop.permute.xlu0 %359
        %362 = vrot.lane.b32.xlu0 %v353, 96
        %v363 = vpop.permute.xlu0 %362
        %vm365 = vcmask 261120
        %v366 = vsel %vm365, %v353, %v357
        %vm367 = vcmask 523264
        %v368 = vsel %vm367, %v366, %v360
        %vm369 = vcmask 785408
        %v370 = vsel %vm369, %v368, %v363
        %372 = vrot.lane.b32.xlu0 %v354, 32
        %v373 = vpop.permute.xlu0 %372
        %375 = vrot.lane.b32.xlu0 %v354, 64
        %v376 = vpop.permute.xlu0 %375
        %378 = vrot.lane.b32.xlu0 %v354, 96
        %v379 = vpop.permute.xlu0 %378
        %v381 = vsel %vm365, %v354, %v373
        %v382 = vsel %vm367, %v381, %v376
        %v383 = vsel %vm369, %v382, %v379
        %v384 = vld [vmem:[%s0] sm:$0x1]
        %v385 = vperm.slane %v384, 0
        %v386 = vmul.f32 %v383, %v385
        %v387 = vld [vmem:[%s0 + $0x1] sm:$0x1]
        %v388 = vperm.slane %v387, 0
        %v389 = vmul.f32 %v383, %v388
        %v390 = vld [vmem:[%s287] sm:$0xff]
        %v391 = vmul.f32 %v390, %v370
        %392 = vrot.lane.b32.xlu0 %v390, 8
        %v393 = vpop.permute.xlu0 %392
        %v394 = vmul.f32 %v393, %v386
        %v395 = vadd.f32 %v391, %v394
        %396 = vrot.lane.b32.xlu0 %v390, 120
        %v397 = vpop.permute.xlu0 %396
        %v398 = vmul.f32 %v397, %v389
        %v399 = vadd.f32 %v395, %v398
        %400 = vst [vmem:[%s337] sm:$0xff] %v399
        %v401 = vld [vmem:[%s297] sm:$0xff]
        %v402 = vmul.f32 %v401, %v370
        %403 = vrot.lane.b32.xlu0 %v401, 8
        %v404 = vpop.permute.xlu0 %403
        %v405 = vmul.f32 %v404, %v386
        %v406 = vadd.f32 %v402, %v405
        %407 = vrot.lane.b32.xlu0 %v401, 120
        %v408 = vpop.permute.xlu0 %407
        %v409 = vmul.f32 %v408, %v389
        %v410 = vadd.f32 %v406, %v409
        %411 = vst [vmem:[%s344] sm:$0xff] %v410
        %s412 = sand.u32 %s163, 1
        %s413 = scalar_lea.sflag [#allocation4], %s412
        %s414 = sand.u32 %s163, 1
        %s415 = smul.addr %s414, 8
        %s416 = scalar_lea.vmem [#allocation7], %s415
        %s417 = sand.u32 %s189, 1
        %s418 = scalar_lea.sflag [#allocation9], %s417
        %s419 = sand.u32 %s189, 1
        %s420 = smul.addr %s419, 8
        %s421 = scalar_lea.vmem [#allocation8], %s420
        // Predicated region
        $region49: #{tpu_custom_call.1} parent=39 // pred_check
          %p422 = pneg %p173
        $region50: #{tpu_custom_call.1} parent=39 // pred_check_branch
          %424 = sbr.rel (%p422) target = $region52
        $region51: #{tpu_custom_call.1} parent=39 // pred_region
          %426 = vsyncadd %s413, 0
          %s427 = smul.addr %s30, 8
          %s428 = scalar_lea.hbm %s5, %s427
          %s430 = sshll.u32 %s416, 4
          %s431 = int_to_ptr.vmem [resolvable:$true] %s430
          %s432 = sshll.u32 %s428, 4
          %s433 = int_to_ptr.hbm [resolvable:$true] %s432
          %435 = dma.vmem_to_hbm [thread:$0]  %s431, 128, %s433, %s413
        $region52: #{tpu_custom_call.1} parent=39 // pred_fallthru
          _
        // Predicated region
        $region53: #{tpu_custom_call.1} parent=39 // pred_check
          %p436 = pneg %p199
        $region54: #{tpu_custom_call.1} parent=39 // pred_check_branch
          %438 = sbr.rel (%p436) target = $region56
        $region55: #{tpu_custom_call.1} parent=39 // pred_region
          %440 = vsyncadd %s418, 0
          %s441 = smul.addr %s30, 8
          %s442 = scalar_lea.hbm %s6, %s441
          %s444 = sshll.u32 %s421, 4
          %s445 = int_to_ptr.vmem [resolvable:$true] %s444
          %s446 = sshll.u32 %s442, 4
          %s447 = int_to_ptr.hbm [resolvable:$true] %s446
          %449 = dma.vmem_to_hbm [thread:$0]  %s445, 128, %s447, %s418
        $region56: #{tpu_custom_call.1} parent=39 // pred_fallthru
          _
      $region40: #{tpu_custom_call.1} parent=5 // pred_fallthru
        _
      %p450 = scmp.le.s32.totalorder 2, %s25
      // Predicated region
      $region57: #{tpu_custom_call.1} parent=5 // pred_check
        %p451 = pneg %p450
      $region58: #{tpu_custom_call.1} parent=5 // pred_check_branch
        %453 = sbr.rel (%p451) target = $region60
      $region59: #{tpu_custom_call.1} parent=5 // pred_region
        %s454 = ssub.s32 %s25, 2
        // Predicated region
        $region61: #{tpu_custom_call.1} parent=59 // pred_check
          %p455 = pneg %p179
        $region62: #{tpu_custom_call.1} parent=59 // pred_check_branch
          %457 = sbr.rel (%p455) target = $region64
        $region63: #{tpu_custom_call.1} parent=59 // pred_region
          %s458 = sand.u32 %s164, 1
          %s459 = scalar_lea.sflag [#allocation4], %s458
          %s460 = sand.u32 %s164, 1
          %s461 = smul.addr %s460, 8
          %s462 = scalar_lea.vmem [#allocation7], %s461
          %464 = dma.done %s459, 128
        $region64: #{tpu_custom_call.1} parent=59 // pred_fallthru
          _
        // Predicated region
        $region65: #{tpu_custom_call.1} parent=59 // pred_check
          %p465 = pneg %p205
        $region66: #{tpu_custom_call.1} parent=59 // pred_check_branch
          %467 = sbr.rel (%p465) target = $region68
        $region67: #{tpu_custom_call.1} parent=59 // pred_region
          %s468 = sand.u32 %s190, 1
          %s469 = scalar_lea.sflag [#allocation9], %s468
          %s470 = sand.u32 %s190, 1
          %s471 = smul.addr %s470, 8
          %s472 = scalar_lea.vmem [#allocation8], %s471
          %474 = dma.done %s469, 128
        $region68: #{tpu_custom_call.1} parent=59 // pred_fallthru
          _
      $region60: #{tpu_custom_call.1} parent=5 // pred_fallthru
        _
    $region6: #{tpu_custom_call.1} parent=1 // loop_footer
      %s29 = sadd.s32 1, %s25
    $region7: #{tpu_custom_call.1} parent=1 // loop_footer_branch
      %24 = sbr.rel target = $region3
    $region8: #{tpu_custom_call.1} parent=1 // loop_exit
      _
    %475 = vsyncpa [#allocation3], 1
    %s476 = scalar_lea.sflag [#allocation3], 1
    %477 = vsyncpa %s476, 1
    %478 = vsyncpa [#allocation6], 1
    %s479 = scalar_lea.sflag [#allocation6], 1
    %480 = vsyncpa %s479, 1
    %481 = vsyncpa [#allocation4], 1
    %s482 = scalar_lea.sflag [#allocation4], 1
    %483 = vsyncpa %s482, 1
    %484 = vsyncpa [#allocation9], 1
    %s485 = scalar_lea.sflag [#allocation9], 1
    %486 = vsyncpa %s485, 1

</llo_original>
